<compile_context>
chip_gen: v7x
topology: tpu7x:2x2x1
jax: 0.10.0
libtpu: 0.0.40
codegen_flags: <defaults>
</compile_context>

<pallas_src>
import jax
import jax.numpy as jnp
from jax.experimental import pallas as pl
from jax.experimental.pallas import tpu as pltpu


def _round_up(x, m):
    return ((x + m - 1) // m) * m


def _depth_loss_kernel(pred_ref, lab_ref, acc_ref):
    """Accumulate per-core partial sums of d and d*d.

    acc_ref block: (1, 2, 8, lanes) f32, resident across the reduction axis.
      acc_ref[0, 0] : elementwise-folded running sum(d)
      acc_ref[0, 1] : elementwise-folded running sum(d*d)
    """
    i = pl.program_id(1)  # reduction ("arbitrary") axis

    @pl.when(i == 0)
    def _():
        acc_ref[...] = jnp.zeros_like(acc_ref)

    # Native-dtype load, cast on the VPU (free) right before the EUP log.
    p = pred_ref[...].astype(jnp.float32)
    t = lab_ref[...].astype(jnp.float32)
    d = jnp.log(p) - jnp.log(t)

    rows, lanes = d.shape
    # Fold the row tile onto 8 sublanes: reduction over the leading (vreg
    # index) axis is pure elementwise vreg adds — VPU only, no XLU.
    d3 = d.reshape(rows // 8, 8, lanes)
    acc_ref[0, 0] += jnp.sum(d3, axis=0)
    acc_ref[0, 1] += jnp.sum(d3 * d3, axis=0)


def depth_loss(pred, labels, *, lanes=1024, max_tile_rows=512, core_splits=2):
    """Pallas TPU implementation of DepthLoss.forward(pred, labels)."""
    assert pred.shape == labels.shape, "Shapes are inconsistent with each other"
    N, C, H, W = pred.shape
    n = H * W
    total = N * C * H * W

    # ---- lane-dense layout + tiling (static Python math) ------------------
    rows = pl.cdiv(total, lanes)
    rows_per_split = pl.cdiv(rows, core_splits)
    # Steps implied by the largest allowed tile ...
    steps = pl.cdiv(rows_per_split, max_tile_rows)
    # ... then shrink the tile to the smallest multiple of 8 that still covers
    # the rows in that many steps (minimises padding traffic).
    tile_rows = min(max_tile_rows, _round_up(pl.cdiv(rows_per_split, steps), 8))
    padded_rows = core_splits * steps * tile_rows
    padded_total = padded_rows * lanes

    # ---- pad with 1.0 in BOTH arrays (loss-neutral), keep native dtype -----
    pred_flat = pred.reshape(-1)
    lab_flat = labels.reshape(-1)
    pad = padded_total - total
    if pad:
        pred_flat = jnp.concatenate(
            [pred_flat, jnp.ones((pad,), pred_flat.dtype)])
        lab_flat = jnp.concatenate(
            [lab_flat, jnp.ones((pad,), lab_flat.dtype)])
    pred2d = pred_flat.reshape(padded_rows, lanes)
    lab2d = lab_flat.reshape(padded_rows, lanes)

    in_bytes = (jnp.dtype(pred.dtype).itemsize
                + jnp.dtype(labels.dtype).itemsize)
    cost = pl.CostEstimate(
        flops=5 * padded_total,
        transcendentals=2 * padded_total,
        bytes_accessed=padded_total * in_bytes + core_splits * 2 * 8 * lanes * 4,
    )

    parts = pl.pallas_call(
        _depth_loss_kernel,
        out_shape=jax.ShapeDtypeStruct((core_splits, 2, 8, lanes), jnp.float32),
        grid_spec=pltpu.PrefetchScalarGridSpec(
            num_scalar_prefetch=0,
            grid=(core_splits, steps),
            in_specs=[
                pl.BlockSpec((tile_rows, lanes),
                             lambda c, i: (c * steps + i, 0)),
                pl.BlockSpec((tile_rows, lanes),
                             lambda c, i: (c * steps + i, 0)),
            ],
            # Output block index is constant along the reduction axis i, so the
            # block stays resident in VMEM and acts as the accumulator; it
            # differs per core-split c (parallel axis), so no cross-core races.
            out_specs=pl.BlockSpec((1, 2, 8, lanes),
                                   lambda c, i: (c, 0, 0, 0)),
        ),
        compiler_params=pltpu.CompilerParams(
            dimension_semantics=("parallel", "arbitrary"),
            vmem_limit_bytes=32 * 1024 * 1024,
        ),
        cost_estimate=cost,
    )(pred2d, lab2d)

    # Tiny final reduction (core_splits * 2 * 8 * lanes elems) + loss formula.
    s = jnp.sum(parts[:, 0], dtype=jnp.float32)
    s2 = jnp.sum(parts[:, 1], dtype=jnp.float32)
    n_f = jnp.float32(n)
    return (s2 / n_f - (s * s) / (n_f * n_f)) / jnp.float32(N)


def depth_loss_ref(pred, labels):
    """Pure-JAX reference for correctness checking."""
    N, C, H, W = pred.shape
    n = H * W
    d = jnp.log(pred.astype(jnp.float32)) - jnp.log(labels.astype(jnp.float32))
    return (jnp.sum(d ** 2) / n - (jnp.sum(d) ** 2) / (n ** 2)) / N


if __name__ == "__main__":
    key = jax.random.PRNGKey(0)
    k1, k2 = jax.random.split(key)

    N, C, H, W = 2, 4, 16, 16
    # Strictly positive inputs (log is taken inside the loss).
    pred = jax.random.uniform(k1, (N, C, H, W), jnp.float32,
                              minval=0.1, maxval=2.0)
    labels = jax.random.uniform(k2, (N, C, H, W), jnp.float32,
                                minval=0.1, maxval=2.0)

    out = depth_loss(pred, labels)
    out = jax.block_until_ready(out)

    ref = depth_loss_ref(pred, labels)
    assert jnp.allclose(out, ref, rtol=1e-5, atol=1e-6), (out, ref)

    print("KERNEL_OK")
</pallas_src>

<mosaic_0001>
module attributes {stable_mosaic.version = 11 : i64} {
  func.func @_depth_loss_kernel(%arg0: i32, %arg1: i32, %arg2: memref<8x1024xf32, #tpu.memory_space<vmem>>, %arg3: memref<8x1024xf32, #tpu.memory_space<vmem>>, %arg4: memref<1x2x8x1024xf32, #tpu.memory_space<vmem>>) attributes {dimension_semantics = [#tpu.dimension_semantics<parallel>, #tpu.dimension_semantics<arbitrary>], iteration_bounds = array<i64: 2, 1>, scalar_prefetch = 0 : i64, scratch_operands = 0 : i64, tpu.core_type = #tpu.core_type<tc>, window_params = [{transform_indices = @transform_0, window_bounds = array<i64: 8, 1024>}, {transform_indices = @transform_1, window_bounds = array<i64: 8, 1024>}, {transform_indices = @transform_2, window_bounds = array<i64: 1, 2, 8, 1024>}]} {
    %c0_i32 = arith.constant 0 : i32
    %0 = arith.cmpi eq, %arg1, %c0_i32 : i32
    %1 = arith.extui %0 : i1 to i32
    %c0_i32_0 = arith.constant 0 : i32
    %2 = arith.cmpi ne, %1, %c0_i32_0 : i32
    scf.if %2 {
      %cst_20 = arith.constant 0.000000e+00 : f32
      %24 = vector.broadcast %cst_20 : f32 to vector<1x2x8x1024xf32>
      %c0_21 = arith.constant 0 : index
      %c0_22 = arith.constant 0 : index
      %c0_23 = arith.constant 0 : index
      %c0_24 = arith.constant 0 : index
      %25 = vector.load %arg4[%c0_21, %c0_22, %c0_23, %c0_24] : memref<1x2x8x1024xf32, #tpu.memory_space<vmem>>, vector<1x2x8x1024xf32>
      tpu.vector_store %arg4[%c0_21, %c0_22, %c0_23, %c0_24], %24 {strides = array<i32>} : memref<1x2x8x1024xf32, #tpu.memory_space<vmem>>, vector<1x2x8x1024xf32>,
    } else {
    }
    %c0 = arith.constant 0 : index
    %c0_1 = arith.constant 0 : index
    %3 = vector.load %arg2[%c0, %c0_1] : memref<8x1024xf32, #tpu.memory_space<vmem>>, vector<8x1024xf32>
    %c0_2 = arith.constant 0 : index
    %c0_3 = arith.constant 0 : index
    %4 = vector.load %arg3[%c0_2, %c0_3] : memref<8x1024xf32, #tpu.memory_space<vmem>>, vector<8x1024xf32>
    %5 = math.log %3 : vector<8x1024xf32>
    %6 = math.log %4 : vector<8x1024xf32>
    %7 = arith.subf %5, %6 : vector<8x1024xf32>
    %8 = vector.shape_cast %7 : vector<8x1024xf32> to vector<1x8x1024xf32>
    %c0_4 = arith.constant 0 : index
    %c0_5 = arith.constant 0 : index
    %c0_6 = arith.constant 0 : index
    %c0_7 = arith.constant 0 : index
    %9 = vector.load %arg4[%c0_4, %c0_5, %c0_6, %c0_7] : memref<1x2x8x1024xf32, #tpu.memory_space<vmem>>, vector<1x1x8x1024xf32>
    %10 = vector.shape_cast %9 : vector<1x1x8x1024xf32> to vector<8x1024xf32>
    %cst = arith.constant dense<0.000000e+00> : vector<8x1024xf32>
    %11 = vector.multi_reduction <add>, %8, %cst [0] : vector<1x8x1024xf32> to vector<8x1024xf32>
    %12 = arith.addf %10, %11 : vector<8x1024xf32>
    %c0_8 = arith.constant 0 : index
    %c0_9 = arith.constant 0 : index
    %c0_10 = arith.constant 0 : index
    %c0_11 = arith.constant 0 : index
    %13 = vector.load %arg4[%c0_8, %c0_9, %c0_10, %c0_11] : memref<1x2x8x1024xf32, #tpu.memory_space<vmem>>, vector<1x1x8x1024xf32>
    %14 = vector.shape_cast %13 : vector<1x1x8x1024xf32> to vector<8x1024xf32>
    %15 = vector.shape_cast %12 : vector<8x1024xf32> to vector<1x1x8x1024xf32>
    tpu.vector_store %arg4[%c0_8, %c0_9, %c0_10, %c0_11], %15 {strides = array<i32>} : memref<1x2x8x1024xf32, #tpu.memory_space<vmem>>, vector<1x1x8x1024xf32>,
    %c0_12 = arith.constant 0 : index
    %c1 = arith.constant 1 : index
    %c0_13 = arith.constant 0 : index
    %c0_14 = arith.constant 0 : index
    %16 = vector.load %arg4[%c0_12, %c1, %c0_13, %c0_14] : memref<1x2x8x1024xf32, #tpu.memory_space<vmem>>, vector<1x1x8x1024xf32>
    %17 = vector.shape_cast %16 : vector<1x1x8x1024xf32> to vector<8x1024xf32>
    %18 = arith.mulf %8, %8 : vector<1x8x1024xf32>
    %cst_15 = arith.constant dense<0.000000e+00> : vector<8x1024xf32>
    %19 = vector.multi_reduction <add>, %18, %cst_15 [0] : vector<1x8x1024xf32> to vector<8x1024xf32>
    %20 = arith.addf %17, %19 : vector<8x1024xf32>
    %c0_16 = arith.constant 0 : index
    %c1_17 = arith.constant 1 : index
    %c0_18 = arith.constant 0 : index
    %c0_19 = arith.constant 0 : index
    %21 = vector.load %arg4[%c0_16, %c1_17, %c0_18, %c0_19] : memref<1x2x8x1024xf32, #tpu.memory_space<vmem>>, vector<1x1x8x1024xf32>
    %22 = vector.shape_cast %21 : vector<1x1x8x1024xf32> to vector<8x1024xf32>
    %23 = vector.shape_cast %20 : vector<8x1024xf32> to vector<1x1x8x1024xf32>
    tpu.vector_store %arg4[%c0_16, %c1_17, %c0_18, %c0_19], %23 {strides = array<i32>} : memref<1x2x8x1024xf32, #tpu.memory_space<vmem>>, vector<1x1x8x1024xf32>,
    return
  }
  func.func @transform_0(%arg0: i32, %arg1: i32) -> (i32, i32) {
    %c1_i32 = arith.constant 1 : i32
    %0 = arith.muli %arg0, %c1_i32 : i32
    %1 = arith.addi %0, %arg1 : i32
    %c0_i32 = arith.constant 0 : i32
    %c0_i32_0 = arith.constant 0 : i32
    return %1, %c0_i32 : i32, i32
  }
  func.func @transform_1(%arg0: i32, %arg1: i32) -> (i32, i32) {
    %c1_i32 = arith.constant 1 : i32
    %0 = arith.muli %arg0, %c1_i32 : i32
    %1 = arith.addi %0, %arg1 : i32
    %c0_i32 = arith.constant 0 : i32
    %c0_i32_0 = arith.constant 0 : i32
    return %1, %c0_i32 : i32, i32
  }
  func.func @transform_2(%arg0: i32, %arg1: i32) -> (i32, i32, i32, i32) {
    %c0_i32 = arith.constant 0 : i32
    %c0_i32_0 = arith.constant 0 : i32
    %c0_i32_1 = arith.constant 0 : i32
    %c0_i32_2 = arith.constant 0 : i32
    return %arg0, %c0_i32, %c0_i32_0, %c0_i32_1 : i32, i32, i32, i32
  }
}

</mosaic_0001>

<llo_original>
// kernel: tpu_custom_call.1
$region0: #{tpu_custom_call.1}
  #allocation0 [shape = 'u32[]', space=smem, size = 0x4, offset = 0x4, fixed_abs, tag = 'smem constant byte address 0x4 - core index']
  #allocation1 [shape = 'u32[144,128]{1,0:T(1,128)}', space=vmem, size = 0x12000, scoped, tag = 'internal scratch']
  %s0 = inlined_call_operand.hbm [shape: f32[16,1024], index: 0, kind: input, shape index: {}]
  %s1 = inlined_call_operand.hbm [shape: f32[16,1024], index: 1, kind: input, shape index: {}]
  %s2 = inlined_call_operand.hbm [shape: f32[2,2,8,1024], index: 2, kind: output, shape index: {}]
  %s3 = sld [smem:[#allocation0]]
  $region53: #{tpu_custom_call.1} parent=0
    _
  %s5 = ssub.s32 1, %s3
  %s6 = scalar_select 0, %s5, %s3
  $region1: #{tpu_custom_call.1} parent=0
    #allocation2 [shape = 'u8[65536]{0}', space=vmem, size = 0x10000, scoped, tag = 'input window, operand 0']
    #allocation3 [shape = 's32[2]{0}', space=sflag, size = 0x8, scoped, tag = 'scoped memory for tpu_custom_call.1']
    #allocation4 [shape = 's32[2]{0}', space=sflag, size = 0x8, scoped, tag = 'scoped memory for tpu_custom_call.1']
    #allocation5 [shape = 'u8[65536]{0}', space=vmem, size = 0x10000, scoped, tag = 'input window, operand 1']
    #allocation6 [shape = 's32[2]{0}', space=sflag, size = 0x8, scoped, tag = 'scoped memory for tpu_custom_call.1']
    #allocation7 [shape = 'u8[131072]{0}', space=vmem, size = 0x20000, scoped, tag = 'output window, operand 0']
    %7 = vsyncpa [#allocation3], 0
    %s8 = scalar_lea.sflag [#allocation3], 1
    %9 = vsyncpa %s8, 0
    %10 = vsyncpa [#allocation6], 0
    %s11 = scalar_lea.sflag [#allocation6], 1
    %12 = vsyncpa %s11, 0
    %13 = vsyncpa [#allocation4], 0
    %s14 = scalar_lea.sflag [#allocation4], 1
    %15 = vsyncpa %s14, 0
    loop: start=0, step=1, limit=4
    $region2: #{tpu_custom_call.1} parent=1 // loop_pre_header
      _
    $region3: #{tpu_custom_call.1} parent=1 // loop_header
      %s17 = sphi 0, %s21
      %p18 = scmp.ge.s32.totalorder %s17, 4
      %s24 = sphi 0, %s36
      %s25 = sphi 0, %s32
      %s26 = sphi 0, %s24
      %s27 = sphi 0, %s25
      %s28 = sphi 0, %s26
      %s29 = sphi 0, %s27
      %s41 = sphi 0, %s43
      %s44 = sphi 0, %s41
      %s45 = sphi 0, %s44
      %s61 = sphi 0, %s45
      %s69 = sphi 0, %s71
      %s72 = sphi 0, %s69
      %s73 = sphi 0, %s72
      %s89 = sphi 0, %s73
      %s95 = sphi 0, %s97
      %s98 = sphi 0, %s95
      %s99 = sphi 0, %s98
      %s115 = sphi 0, %s99
    $region4: #{tpu_custom_call.1} parent=1 // loop_header_branch
      %20 = sbr.rel (%p18) target = $region8
    $region5: #{tpu_custom_call.1} parent=1 // loop_body
      %s22 = ssub.s32 %s17, 1
      %s23 = ssub.s32 %s17, 2
      %s30 = sadd.s32 1, %s25
      %p31 = scmp.ge.s32.totalorder %s30, 1
      %s32 = scalar_select %p31, 0, %s30
      %s33 = sadd.s32 1, %s24
      %s34 = scalar_select %p31, %s33, %s24
      %p35 = scmp.ge.s32.totalorder %s34, 2
      %s36 = scalar_select %p35, 0, %s34
      %s37 = sadd.s32 %s24, %s25
      %s38 = sadd.s32 %s36, %s32
      %s39 = ssub.s32 %s37, %s38
      %p40 = scmp.eq.s32.totalorder %s39, 0
      %s42 = sadd.s32 %s41, 1
      %s43 = scalar_select %p40, %s41, %s42
      %p46 = pneg %p40
      %p47 = scmp.eq.s32.totalorder %s17, 1
      %p48 = por %p46, %p47
      %p49 = scmp.ne.s32.totalorder %s41, %s44
      %p50 = scmp.eq.s32.totalorder %s17, 0
      %p51 = por %p49, %p50
      %p52 = scmp.ne.s32.totalorder %s41, %s44
      %p53 = scmp.eq.s32.totalorder %s22, 1
      %p54 = por %p52, %p53
      %p55 = scmp.ne.s32.totalorder %s44, %s45
      %p56 = scmp.eq.s32.totalorder %s22, 0
      %p57 = por %p55, %p56
      %p58 = scmp.ne.s32.totalorder %s44, %s45
      %p59 = scmp.eq.s32.totalorder %s23, 1
      %p60 = por %p58, %p59
      %p62 = scmp.ne.s32.totalorder %s45, %s61
      %p63 = scmp.eq.s32.totalorder %s23, 0
      %p64 = por %p62, %p63
      %s65 = sadd.s32 %s24, %s25
      %s66 = sadd.s32 %s36, %s32
      %s67 = ssub.s32 %s65, %s66
      %p68 = scmp.eq.s32.totalorder %s67, 0
      %s70 = sadd.s32 %s69, 1
      %s71 = scalar_select %p68, %s69, %s70
      %p74 = pneg %p68
      %p75 = scmp.eq.s32.totalorder %s17, 1
      %p76 = por %p74, %p75
      %p77 = scmp.ne.s32.totalorder %s69, %s72
      %p78 = scmp.eq.s32.totalorder %s17, 0
      %p79 = por %p77, %p78
      %p80 = scmp.ne.s32.totalorder %s69, %s72
      %p81 = scmp.eq.s32.totalorder %s22, 1
      %p82 = por %p80, %p81
      %p83 = scmp.ne.s32.totalorder %s72, %s73
      %p84 = scmp.eq.s32.totalorder %s22, 0
      %p85 = por %p83, %p84
      %p86 = scmp.ne.s32.totalorder %s72, %s73
      %p87 = scmp.eq.s32.totalorder %s23, 1
      %p88 = por %p86, %p87
      %p90 = scmp.ne.s32.totalorder %s73, %s89
      %p91 = scmp.eq.s32.totalorder %s23, 0
      %p92 = por %p90, %p91
      %s93 = ssub.s32 %s24, %s36
      %p94 = scmp.eq.s32.totalorder %s93, 0
      %s96 = sadd.s32 %s95, 1
      %s97 = scalar_select %p94, %s95, %s96
      %p100 = pneg %p94
      %p101 = scmp.eq.s32.totalorder %s17, 1
      %p102 = por %p100, %p101
      %p103 = scmp.ne.s32.totalorder %s95, %s98
      %p104 = scmp.eq.s32.totalorder %s17, 0
      %p105 = por %p103, %p104
      %p106 = scmp.ne.s32.totalorder %s95, %s98
      %p107 = scmp.eq.s32.totalorder %s22, 1
      %p108 = por %p106, %p107
      %p109 = scmp.ne.s32.totalorder %s98, %s99
      %p110 = scmp.eq.s32.totalorder %s22, 0
      %p111 = por %p109, %p110
      %p112 = scmp.ne.s32.totalorder %s98, %s99
      %p113 = scmp.eq.s32.totalorder %s23, 1
      %p114 = por %p112, %p113
      %p116 = scmp.ne.s32.totalorder %s99, %s115
      %p117 = scmp.eq.s32.totalorder %s23, 0
      %p118 = por %p116, %p117
      %p119 = scmp.le.s32.totalorder 1, %s17
      %p120 = scmp.lt.s32.totalorder %s17, 3
      %p121 = pnand %p119, %p120
      %p122 = pneg %p121
      // Predicated region
      $region9: #{tpu_custom_call.1} parent=5 // pred_check
        _
      $region10: #{tpu_custom_call.1} parent=5 // pred_check_branch
        %124 = sbr.rel (%p121) target = $region12
      $region11: #{tpu_custom_call.1} parent=5 // pred_region
        %s125 = ssub.s32 %s17, 1
      $region12: #{tpu_custom_call.1} parent=5 // pred_fallthru
        _
      %p126 = scmp.lt.s32.totalorder %s17, 2
      // Predicated region
      $region13: #{tpu_custom_call.1} parent=5 // pred_check
        %p127 = pneg %p126
      $region14: #{tpu_custom_call.1} parent=5 // pred_check_branch
        %129 = sbr.rel (%p127) target = $region16
      $region15: #{tpu_custom_call.1} parent=5 // pred_region
        // Predicated region
        $region17: #{tpu_custom_call.1} parent=15 // pred_check
          %p130 = pneg %p51
        $region18: #{tpu_custom_call.1} parent=15 // pred_check_branch
          %132 = sbr.rel (%p130) target = $region20
        $region19: #{tpu_custom_call.1} parent=15 // pred_region
          %s133 = sand.u32 %s41, 1
          %s134 = scalar_lea.sflag [#allocation3], %s133
          %s135 = sand.u32 %s41, 1
          %s136 = smul.addr %s135, 64
          %s137 = scalar_lea.vmem [#allocation2], %s136
          %s138 = sadd.s32 %s24, %s25
          %s140 = ssub.s32 1024, 1024
          %141 = vsyncadd %s134, %s140
          %s142 = smul.addr %s138, 8
          %s143 = smul.addr %s142, 128
          %s144 = scalar_lea.hbm %s0, %s143
          %s146 = sshll.u32 %s137, 4
          %s147 = int_to_ptr.vmem [resolvable:$true] %s146
          %149 = dma.hbm_to_vmem [thread:$0]  %s144, 1024, %s147, %s134
        $region20: #{tpu_custom_call.1} parent=15 // pred_fallthru
          _
        // Predicated region
        $region21: #{tpu_custom_call.1} parent=15 // pred_check
          %p150 = pneg %p79
        $region22: #{tpu_custom_call.1} parent=15 // pred_check_branch
          %152 = sbr.rel (%p150) target = $region24
        $region23: #{tpu_custom_call.1} parent=15 // pred_region
          %s153 = sand.u32 %s69, 1
          %s154 = scalar_lea.sflag [#allocation6], %s153
          %s155 = sand.u32 %s69, 1
          %s156 = smul.addr %s155, 64
          %s157 = scalar_lea.vmem [#allocation5], %s156
          %s158 = sadd.s32 %s24, %s25
          %s160 = ssub.s32 1024, 1024
          %161 = vsyncadd %s154, %s160
          %s162 = smul.addr %s158, 8
          %s163 = smul.addr %s162, 128
          %s164 = scalar_lea.hbm %s1, %s163
          %s166 = sshll.u32 %s157, 4
          %s167 = int_to_ptr.vmem [resolvable:$true] %s166
          %169 = dma.hbm_to_vmem [thread:$0]  %s164, 1024, %s167, %s154
        $region24: #{tpu_custom_call.1} parent=15 // pred_fallthru
          _
      $region16: #{tpu_custom_call.1} parent=5 // pred_fallthru
        _
      %p170 = scmp.le.s32.totalorder 1, %s17
      %p171 = scmp.lt.s32.totalorder %s17, 3
      %p172 = pnand %p170, %p171
      %p173 = pneg %p172
      // Predicated region
      $region25: #{tpu_custom_call.1} parent=5 // pred_check
        _
      $region26: #{tpu_custom_call.1} parent=5 // pred_check_branch
        %175 = sbr.rel (%p172) target = $region28
      $region27: #{tpu_custom_call.1} parent=5 // pred_region
        %s176 = ssub.s32 %s17, 1
        %s177 = sand.u32 %s44, 1
        %s178 = scalar_lea.sflag [#allocation3], %s177
        %s179 = sand.u32 %s44, 1
        %s180 = smul.addr %s179, 64
        %s181 = scalar_lea.vmem [#allocation2], %s180
        // Predicated region
        $region29: #{tpu_custom_call.1} parent=27 // pred_check
          %p182 = pneg %p57
        $region30: #{tpu_custom_call.1} parent=27 // pred_check_branch
          %184 = sbr.rel (%p182) target = $region32
        $region31: #{tpu_custom_call.1} parent=27 // pred_region
          %185 = dma.done %s178, 1024
        $region32: #{tpu_custom_call.1} parent=27 // pred_fallthru
          _
        %s186 = sand.u32 %s72, 1
        %s187 = scalar_lea.sflag [#allocation6], %s186
        %s188 = sand.u32 %s72, 1
        %s189 = smul.addr %s188, 64
        %s190 = scalar_lea.vmem [#allocation5], %s189
        // Predicated region
        $region33: #{tpu_custom_call.1} parent=27 // pred_check
          %p191 = pneg %p85
        $region34: #{tpu_custom_call.1} parent=27 // pred_check_branch
          %193 = sbr.rel (%p191) target = $region36
        $region35: #{tpu_custom_call.1} parent=27 // pred_region
          %194 = dma.done %s187, 1024
        $region36: #{tpu_custom_call.1} parent=27 // pred_fallthru
          _
        %s195 = sand.u32 %s44, 1
        %s196 = scalar_lea.sflag [#allocation3], %s195
        %s197 = sand.u32 %s44, 1
        %s198 = smul.addr %s197, 64
        %s199 = scalar_lea.vmem [#allocation2], %s198
        %p200 = pneg %p57
        %p201 = pneg %p54
        %s202 = sand.u32 %s72, 1
        %s203 = scalar_lea.sflag [#allocation6], %s202
        %s204 = sand.u32 %s72, 1
        %s205 = smul.addr %s204, 64
        %s206 = scalar_lea.vmem [#allocation5], %s205
        %p207 = pneg %p85
        %p208 = pneg %p82
        %p209 = pneg %p111
        %p210 = pneg %p108
        %s211 = sand.u32 %s98, 1
        %s212 = scalar_lea.sflag [#allocation4], %s211
        %s213 = sand.u32 %s98, 1
        %s214 = smul.addr %s213, 128
        %s215 = scalar_lea.vmem [#allocation7], %s214
        %s216 = sadd.s32 %s26, %s27
        %s217 = sadd.s32 %s26, %s27
        %p218 = scmp.eq.s32.totalorder %s27, 0
        // Predicated region
        $region37: #{tpu_custom_call.1} parent=27 // pred_check
          %p219 = pneg %p218
        $region38: #{tpu_custom_call.1} parent=27 // pred_check_branch
          %221 = sbr.rel (%p219) target = $region40
        $region39: #{tpu_custom_call.1} parent=27 // pred_region
          %222 = vst [vmem:[%s215] sm:$0xff] 0.0
          %223 = vst [vmem:[%s215 + $0x8] sm:$0xff] 0.0
          %224 = vst [vmem:[%s215 + $0x10] sm:$0xff] 0.0
          %225 = vst [vmem:[%s215 + $0x18] sm:$0xff] 0.0
          %226 = vst [vmem:[%s215 + $0x20] sm:$0xff] 0.0
          %227 = vst [vmem:[%s215 + $0x28] sm:$0xff] 0.0
          %228 = vst [vmem:[%s215 + $0x30] sm:$0xff] 0.0
          %229 = vst [vmem:[%s215 + $0x38] sm:$0xff] 0.0
          %230 = vst [vmem:[%s215 + $0x40] sm:$0xff] 0.0
          %231 = vst [vmem:[%s215 + $0x48] sm:$0xff] 0.0
          %232 = vst [vmem:[%s215 + $0x50] sm:$0xff] 0.0
          %233 = vst [vmem:[%s215 + $0x58] sm:$0xff] 0.0
          %234 = vst [vmem:[%s215 + $0x60] sm:$0xff] 0.0
          %235 = vst [vmem:[%s215 + $0x68] sm:$0xff] 0.0
          %236 = vst [vmem:[%s215 + $0x70] sm:$0xff] 0.0
          %237 = vst [vmem:[%s215 + $0x78] sm:$0xff] 0.0
        $region40: #{tpu_custom_call.1} parent=27 // pred_fallthru
          _
        %v238 = vld [vmem:[%s181] sm:$0xff]
        %v239 = vld [vmem:[%s181 + $0x8] sm:$0xff]
        %v240 = vld [vmem:[%s181 + $0x10] sm:$0xff]
        %v241 = vld [vmem:[%s181 + $0x18] sm:$0xff]
        %v242 = vld [vmem:[%s181 + $0x20] sm:$0xff]
        %v243 = vld [vmem:[%s181 + $0x28] sm:$0xff]
        %v244 = vld [vmem:[%s181 + $0x30] sm:$0xff]
        %v245 = vld [vmem:[%s181 + $0x38] sm:$0xff]
        %v246 = vld [vmem:[%s190] sm:$0xff]
        %v247 = vld [vmem:[%s190 + $0x8] sm:$0xff]
        %v248 = vld [vmem:[%s190 + $0x10] sm:$0xff]
        %v249 = vld [vmem:[%s190 + $0x18] sm:$0xff]
        %v250 = vld [vmem:[%s190 + $0x20] sm:$0xff]
        %v251 = vld [vmem:[%s190 + $0x28] sm:$0xff]
        %v252 = vld [vmem:[%s190 + $0x30] sm:$0xff]
        %v253 = vld [vmem:[%s190 + $0x38] sm:$0xff]
        %v254 = vlog2.pop %v238
        %v255 = vmul.f32 %v254, 0.6931472
        %v256 = vlog2.pop %v239
        %v257 = vmul.f32 %v256, 0.6931472
        %v258 = vlog2.pop %v240
        %v259 = vmul.f32 %v258, 0.6931472
        %v260 = vlog2.pop %v241
        %v261 = vmul.f32 %v260, 0.6931472
        %v262 = vlog2.pop %v242
        %v263 = vmul.f32 %v262, 0.6931472
        %v264 = vlog2.pop %v243
        %v265 = vmul.f32 %v264, 0.6931472
        %v266 = vlog2.pop %v244
        %v267 = vmul.f32 %v266, 0.6931472
        %v268 = vlog2.pop %v245
        %v269 = vmul.f32 %v268, 0.6931472
        %v270 = vlog2.pop %v246
        %v271 = vmul.f32 %v270, 0.6931472
        %v272 = vlog2.pop %v247
        %v273 = vmul.f32 %v272, 0.6931472
        %v274 = vlog2.pop %v248
        %v275 = vmul.f32 %v274, 0.6931472
        %v276 = vlog2.pop %v249
        %v277 = vmul.f32 %v276, 0.6931472
        %v278 = vlog2.pop %v250
        %v279 = vmul.f32 %v278, 0.6931472
        %v280 = vlog2.pop %v251
        %v281 = vmul.f32 %v280, 0.6931472
        %v282 = vlog2.pop %v252
        %v283 = vmul.f32 %v282, 0.6931472
        %v284 = vlog2.pop %v253
        %v285 = vmul.f32 %v284, 0.6931472
        %v286 = vsub.f32 %v255, %v271
        %v287 = vsub.f32 %v257, %v273
        %v288 = vsub.f32 %v259, %v275
        %v289 = vsub.f32 %v261, %v277
        %v290 = vsub.f32 %v263, %v279
        %v291 = vsub.f32 %v265, %v281
        %v292 = vsub.f32 %v267, %v283
        %v293 = vsub.f32 %v269, %v285
        %v294 = vld [vmem:[%s215] sm:$0xff]
        %v295 = vld [vmem:[%s215 + $0x8] sm:$0xff]
        %v296 = vld [vmem:[%s215 + $0x10] sm:$0xff]
        %v297 = vld [vmem:[%s215 + $0x18] sm:$0xff]
        %v298 = vld [vmem:[%s215 + $0x20] sm:$0xff]
        %v299 = vld [vmem:[%s215 + $0x28] sm:$0xff]
        %v300 = vld [vmem:[%s215 + $0x30] sm:$0xff]
        %v301 = vld [vmem:[%s215 + $0x38] sm:$0xff]
        %v302 = vadd.f32 %v286, 0.0
        %v303 = vadd.f32 %v287, 0.0
        %v304 = vadd.f32 %v288, 0.0
        %v305 = vadd.f32 %v289, 0.0
        %v306 = vadd.f32 %v290, 0.0
        %v307 = vadd.f32 %v291, 0.0
        %v308 = vadd.f32 %v292, 0.0
        %v309 = vadd.f32 %v293, 0.0
        %v310 = vadd.f32 %v294, %v302
        %v311 = vadd.f32 %v295, %v303
        %v312 = vadd.f32 %v296, %v304
        %v313 = vadd.f32 %v297, %v305
        %v314 = vadd.f32 %v298, %v306
        %v315 = vadd.f32 %v299, %v307
        %v316 = vadd.f32 %v300, %v308
        %v317 = vadd.f32 %v301, %v309
        %318 = vst [vmem:[%s215] sm:$0xff] %v310
        %319 = vst [vmem:[%s215 + $0x8] sm:$0xff] %v311
        %320 = vst [vmem:[%s215 + $0x10] sm:$0xff] %v312
        %321 = vst [vmem:[%s215 + $0x18] sm:$0xff] %v313
        %322 = vst [vmem:[%s215 + $0x20] sm:$0xff] %v314
        %323 = vst [vmem:[%s215 + $0x28] sm:$0xff] %v315
        %324 = vst [vmem:[%s215 + $0x30] sm:$0xff] %v316
        %325 = vst [vmem:[%s215 + $0x38] sm:$0xff] %v317
        %s326 = scalar_lea.vmem %s215, 64 [#allocation7]
        %v327 = vld [vmem:[%s326] sm:$0xff]
        %v328 = vld [vmem:[%s326 + $0x8] sm:$0xff]
        %v329 = vld [vmem:[%s326 + $0x10] sm:$0xff]
        %v330 = vld [vmem:[%s326 + $0x18] sm:$0xff]
        %v331 = vld [vmem:[%s326 + $0x20] sm:$0xff]
        %v332 = vld [vmem:[%s326 + $0x28] sm:$0xff]
        %v333 = vld [vmem:[%s326 + $0x30] sm:$0xff]
        %v334 = vld [vmem:[%s326 + $0x38] sm:$0xff]
        %v335 = vmul.f32 %v286, %v286
        %v336 = vmul.f32 %v287, %v287
        %v337 = vmul.f32 %v288, %v288
        %v338 = vmul.f32 %v289, %v289
        %v339 = vmul.f32 %v290, %v290
        %v340 = vmul.f32 %v291, %v291
        %v341 = vmul.f32 %v292, %v292
        %v342 = vmul.f32 %v293, %v293
        %v343 = vadd.f32 %v335, 0.0
        %v344 = vadd.f32 %v336, 0.0
        %v345 = vadd.f32 %v337, 0.0
        %v346 = vadd.f32 %v338, 0.0
        %v347 = vadd.f32 %v339, 0.0
        %v348 = vadd.f32 %v340, 0.0
        %v349 = vadd.f32 %v341, 0.0
        %v350 = vadd.f32 %v342, 0.0
        %v351 = vadd.f32 %v327, %v343
        %v352 = vadd.f32 %v328, %v344
        %v353 = vadd.f32 %v329, %v345
        %v354 = vadd.f32 %v330, %v346
        %v355 = vadd.f32 %v331, %v347
        %v356 = vadd.f32 %v332, %v348
        %v357 = vadd.f32 %v333, %v349
        %v358 = vadd.f32 %v334, %v350
        %359 = vst [vmem:[%s326] sm:$0xff] %v351
        %360 = vst [vmem:[%s326 + $0x8] sm:$0xff] %v352
        %361 = vst [vmem:[%s326 + $0x10] sm:$0xff] %v353
        %362 = vst [vmem:[%s326 + $0x18] sm:$0xff] %v354
        %363 = vst [vmem:[%s326 + $0x20] sm:$0xff] %v355
        %364 = vst [vmem:[%s326 + $0x28] sm:$0xff] %v356
        %365 = vst [vmem:[%s326 + $0x30] sm:$0xff] %v357
        %366 = vst [vmem:[%s326 + $0x38] sm:$0xff] %v358
        %s367 = sand.u32 %s98, 1
        %s368 = scalar_lea.sflag [#allocation4], %s367
        %s369 = sand.u32 %s98, 1
        %s370 = smul.addr %s369, 128
        %s371 = scalar_lea.vmem [#allocation7], %s370
        // Predicated region
        $region41: #{tpu_custom_call.1} parent=27 // pred_check
          %p372 = pneg %p108
        $region42: #{tpu_custom_call.1} parent=27 // pred_check_branch
          %374 = sbr.rel (%p372) target = $region44
        $region43: #{tpu_custom_call.1} parent=27 // pred_region
          %s376 = ssub.s32 2048, 2048
          %377 = vsyncadd %s368, %s376
          %s378 = smul.addr %s26, 16
          %s379 = smul.addr %s378, 128
          %s380 = scalar_lea.hbm %s2, %s379
          %s381 = sshll.u32 %s371, 4
          %s382 = int_to_ptr.vmem [resolvable:$true] %s381
          %387 = dma.vmem_to_hbm [thread:$0]  %s382, 2048, %s380, %s368, 1024, 1024, 64
        $region44: #{tpu_custom_call.1} parent=27 // pred_fallthru
          _
      $region28: #{tpu_custom_call.1} parent=5 // pred_fallthru
        _
      %p388 = scmp.le.s32.totalorder 2, %s17
      // Predicated region
      $region45: #{tpu_custom_call.1} parent=5 // pred_check
        %p389 = pneg %p388
      $region46: #{tpu_custom_call.1} parent=5 // pred_check_branch
        %391 = sbr.rel (%p389) target = $region48
      $region47: #{tpu_custom_call.1} parent=5 // pred_region
        %s392 = ssub.s32 %s17, 2
        // Predicated region
        $region49: #{tpu_custom_call.1} parent=47 // pred_check
          %p393 = pneg %p114
        $region50: #{tpu_custom_call.1} parent=47 // pred_check_branch
          %395 = sbr.rel (%p393) target = $region52
        $region51: #{tpu_custom_call.1} parent=47 // pred_region
          %s396 = sand.u32 %s99, 1
          %s397 = scalar_lea.sflag [#allocation4], %s396
          %s398 = sand.u32 %s99, 1
          %s399 = smul.addr %s398, 128
          %s400 = scalar_lea.vmem [#allocation7], %s399
          %401 = dma.done %s397, 2048
        $region52: #{tpu_custom_call.1} parent=47 // pred_fallthru
          _
      $region48: #{tpu_custom_call.1} parent=5 // pred_fallthru
        _
    $region6: #{tpu_custom_call.1} parent=1 // loop_footer
      %s21 = sadd.s32 1, %s17
    $region7: #{tpu_custom_call.1} parent=1 // loop_footer_branch
      %16 = sbr.rel target = $region3
    $region8: #{tpu_custom_call.1} parent=1 // loop_exit
      _
    %402 = vsyncpa [#allocation3], 1
    %s403 = scalar_lea.sflag [#allocation3], 1
    %404 = vsyncpa %s403, 1
    %405 = vsyncpa [#allocation6], 1
    %s406 = scalar_lea.sflag [#allocation6], 1
    %407 = vsyncpa %s406, 1
    %408 = vsyncpa [#allocation4], 1
    %s409 = scalar_lea.sflag [#allocation4], 1
    %410 = vsyncpa %s409, 1

</llo_original>
